<compile_context>
chip_gen: v5e
topology: v5e:2x2
jax: 0.10.0
libtpu: 0.0.40
codegen_flags: <defaults>
</compile_context>

<pallas_src>
import functools

import jax
import jax.numpy as jnp
from jax.experimental import pallas as pl
from jax.experimental.pallas import tpu as pltpu

LANE = 128      # lane width of a vreg (last dim)
SUBLANE = 8     # sublane count (second-to-last dim)


def _round_up(x, m):
    return (x + m - 1) // m * m


def _vmem_capacity_bytes():
    """Per-core VMEM capacity; conservative fallback if the query fails."""
    try:
        return int(pltpu.get_tpu_info().vmem_capacity_bytes)
    except Exception:
        return 64 << 20   # v7x per-core size -> safe assumption everywhere


# ---------------------------------------------------------------------------
# Fused kernel: one grid step = one token tile through ALL layers.
# Weights/biases are VMEM-resident (constant index_map, single-buffered);
# the running activation stays in vregs/VMEM values (f32), never touching HBM.
# ---------------------------------------------------------------------------
def _mlp_fused_kernel(x_ref, *refs, num_layers):
    # refs layout: w_0, b_0, w_1, b_1, ..., w_{L-1}, b_{L-1}, o_ref
    o_ref = refs[-1]
    wb = refs[:-1]

    h = x_ref[...]                              # (tm, d_in), input dtype
    for i in range(num_layers):                 # static unroll over layers
        w = wb[2 * i][...]                      # (d_in, d_out), bf16
        b = wb[2 * i + 1][...]                  # (1, d_out), f32
        y = jnp.dot(h.astype(w.dtype), w,
                    preferred_element_type=jnp.float32)
        y = y + b                               # f32 epilogue
        if i < num_layers - 1:
            y = jnp.maximum(y, 0.0)
        h = y                                   # f32 activation
    o_ref[...] = h.astype(o_ref.dtype)


# Layer-wise fallback kernel: one Linear (+ optional ReLU), column-tiled.
def _linear_kernel(x_ref, w_ref, b_ref, o_ref, *, apply_relu):
    y = jnp.dot(x_ref[...].astype(w_ref.dtype), w_ref[...],
                preferred_element_type=jnp.float32)
    y = y + b_ref[...]
    if apply_relu:
        y = jnp.maximum(y, 0.0)
    o_ref[...] = y.astype(o_ref.dtype)


# ---------------------------------------------------------------------------
# Parameter construction / preparation.
# ---------------------------------------------------------------------------
def init_mlp_params(key, input_dim, hidden_dim, output_dim, num_layers):
    """Deterministic init matching the layer shapes of the PyTorch module.
    Weights are stored as (in, out) so x @ W + b == PyTorch x @ W.T + b."""
    h = [hidden_dim] * (num_layers - 1)
    params = []
    for n, k in zip([input_dim] + h, h + [output_dim]):
        key, kw, kb = jax.random.split(key, 3)
        bound = 1.0 / float(n) ** 0.5            # nn.Linear-like uniform init
        w = jax.random.uniform(kw, (n, k), jnp.float32, -bound, bound)
        b = jax.random.uniform(kb, (k,), jnp.float32, -bound, bound)
        params.append((w, b))
    return params


def prepare_params(params, param_dtype=jnp.bfloat16):
    """Cast weights to the MXU input dtype; biases stay f32 as (1, d_out).

    No lane padding: full-array weight blocks are legal at any shape and the
    x/out blocks use the true feature dim (block dim == full array dim), so
    we never pay HBM/DMA/MXU cost for padding of small dims."""
    return [(w.astype(param_dtype), b.astype(jnp.float32).reshape(1, -1))
            for w, b in params]


# ---------------------------------------------------------------------------
# Token-tile selection: multiple of 8, <=12.5% padded rows, >=2 grid steps.
# ---------------------------------------------------------------------------
def _choose_token_tile(n_tokens, max_tile):
    n8 = _round_up(max(n_tokens, 1), SUBLANE)
    if n8 <= SUBLANE:
        return SUBLANE
    cap = min(max_tile, n8 - SUBLANE)            # guarantees >= 2 grid steps
    cap = max(SUBLANE, (cap // SUBLANE) * SUBLANE)
    for tm in range(cap, SUBLANE - 1, -SUBLANE):
        waste = _round_up(n8, tm) - n8
        if waste * 8 <= n8:                      # <= 12.5% wasted rows
            return tm
    return SUBLANE


# ---------------------------------------------------------------------------
# Layer-wise fallback: one pallas_call per Linear, output-column tiled.
# ---------------------------------------------------------------------------
def _linear_layer(x, w, b, *, apply_relu, out_dtype, tm, cap):
    n, din = x.shape
    dout = w.shape[1]

    # Contraction dim stays whole (block == full array dim); tile output
    # columns so the resident weight slab fits comfortably in VMEM.
    # TODO(synk): add a K (contraction) tiling path for extremely large din.
    if dout % LANE == 0:
        tn = LANE
        while tn * 2 <= dout and (din * tn * 2 * w.dtype.itemsize) <= cap // 4:
            tn *= 2
    else:
        tn = dout

    need = (2 * tm * din * x.dtype.itemsize            # in tiles (x2)
            + 2 * din * tn * w.dtype.itemsize          # weight tiles (x2)
            + 2 * tn * 4                               # bias tiles (x2)
            + 2 * tm * tn * jnp.dtype(out_dtype).itemsize   # out tiles (x2)
            + tm * tn * 4)                             # live f32 accumulator
    vmem_limit = int(min(int(cap * 0.75), max(int(need * 1.25), 16 << 20)))

    kernel = functools.partial(_linear_kernel, apply_relu=apply_relu)
    return pl.pallas_call(
        kernel,
        out_shape=jax.ShapeDtypeStruct((n, dout), out_dtype),
        grid=(pl.cdiv(n, tm), pl.cdiv(dout, tn)),
        in_specs=[pl.BlockSpec((tm, din), lambda i, j: (i, 0)),
                  pl.BlockSpec((din, tn), lambda i, j: (0, j)),
                  pl.BlockSpec((1, tn), lambda i, j: (0, j))],
        out_specs=pl.BlockSpec((tm, tn), lambda i, j: (i, j)),
        compiler_params=pltpu.CompilerParams(
            dimension_semantics=("parallel", "parallel"),
            vmem_limit_bytes=vmem_limit),
    )(x, w, b)


# ---------------------------------------------------------------------------
# Forward wrapper.
# ---------------------------------------------------------------------------
def mlp_forward(x, prepared, *, token_tile=None, out_dtype=None,
                force_layerwise=False):
    """x: (..., input_dim) -> (..., output_dim) in out_dtype (default x.dtype)."""
    lead = x.shape[:-1]
    din = prepared[0][0].shape[0]
    dout = prepared[-1][0].shape[1]
    assert x.shape[-1] == din, (x.shape, din)
    out_dtype = jnp.dtype(out_dtype) if out_dtype is not None else x.dtype

    xf = x.reshape(-1, din)                      # free reshape, no copy
    n = xf.shape[0]
    num_layers = len(prepared)
    dims = [din] + [w.shape[1] for w, _ in prepared]
    dmax = max(dims)

    # Bound the live f32 activation (tm * dmax * 4B) so wide layers don't
    # spill the vreg file; sweep `token_tile` per generation if needed
    # (v7x amortizes grid overhead better and tolerates tm=1024).
    if token_tile is None:
        token_tile = 256 if dmax >= 512 else 512
    tm = _choose_token_tile(n, token_tile)

    cap = _vmem_capacity_bytes()
    flat = [a for wb in prepared for a in wb]
    param_bytes = sum(a.size * a.dtype.itemsize for a in flat)   # x1: Buffered(1)
    in_bytes = 2 * tm * din * xf.dtype.itemsize                  # double-buffered
    out_bytes = 2 * tm * dout * jnp.dtype(out_dtype).itemsize    # double-buffered
    act_bytes = 2 * tm * dmax * 4                                # live f32 h / y
    need = param_bytes + in_bytes + out_bytes + act_bytes

    use_fused = (not force_layerwise) and need <= cap // 2
    if not use_fused:
        # Resident params would not fit (e.g. many large layers on v7x's
        # 64 MiB per-core VMEM): run layer-by-layer with column-tiled weights.
        h = xf
        for i, (w, b) in enumerate(prepared):
            last = (i == num_layers - 1)
            h = _linear_layer(h, w, b, apply_relu=not last,
                              out_dtype=(out_dtype if last else w.dtype),
                              tm=tm, cap=cap)
        return h.reshape(*lead, dout)

    # -------- fused path: one pallas_call for the whole MLP --------
    in_specs = [pl.BlockSpec((tm, din), lambda i: (i, 0))]
    for w, b in prepared:
        # Resident weights/biases: same block every grid step, single buffer.
        in_specs.append(pl.BlockSpec(w.shape, lambda i: (0, 0),
                                     pipeline_mode=pl.Buffered(1)))
        in_specs.append(pl.BlockSpec(b.shape, lambda i: (0, 0),
                                     pipeline_mode=pl.Buffered(1)))
    out_specs = pl.BlockSpec((tm, dout), lambda i: (i, 0))

    vmem_limit = int(min(int(cap * 0.75), max(int(need * 1.25), 16 << 20)))
    flops = 2 * n * sum(dims[i] * dims[i + 1] for i in range(num_layers))
    bytes_accessed = (xf.size * xf.dtype.itemsize + param_bytes
                      + n * dout * jnp.dtype(out_dtype).itemsize)

    kernel = functools.partial(_mlp_fused_kernel, num_layers=num_layers)
    out = pl.pallas_call(
        kernel,
        out_shape=jax.ShapeDtypeStruct((n, dout), out_dtype),
        grid=(pl.cdiv(n, tm),),
        in_specs=in_specs,
        out_specs=out_specs,
        compiler_params=pltpu.CompilerParams(
            dimension_semantics=("parallel",),   # shard token tiles over TCs
            vmem_limit_bytes=vmem_limit),
        cost_estimate=pl.CostEstimate(
            flops=flops, transcendentals=0, bytes_accessed=bytes_accessed),
    )(xf, *flat)

    return out.reshape(*lead, dout)


# ---------------------------------------------------------------------------
# Pure-JAX reference (same dtype discipline: bf16 MXU inputs, f32 accumulate).
# ---------------------------------------------------------------------------
def mlp_reference(x, params, param_dtype=jnp.bfloat16):
    num_layers = len(params)
    h = x
    for i, (w, b) in enumerate(params):
        h = jnp.dot(h.astype(param_dtype), w.astype(param_dtype),
                    preferred_element_type=jnp.float32) + b.astype(jnp.float32)
        if i < num_layers - 1:
            h = jnp.maximum(h, 0.0)
    return h


if __name__ == "__main__":
    key = jax.random.PRNGKey(0)
    kx, kp = jax.random.split(key)

    # Small shapes consistent with the module's forward:
    # x: (batch=2, seq=8, input_dim=32), hidden=64, output=16, 3 layers.
    input_dim, hidden_dim, output_dim, num_layers = 32, 64, 16, 3
    x = jax.random.normal(kx, (2, 8, input_dim), jnp.float32)

    params = init_mlp_params(kp, input_dim, hidden_dim, output_dim, num_layers)
    prepared = prepare_params(params, param_dtype=jnp.bfloat16)

    ref = mlp_reference(x, params, param_dtype=jnp.bfloat16)

    # Fused (all-layers-in-one-pallas_call) path.
    out = jax.block_until_ready(mlp_forward(x, prepared))
    assert out.shape == (2, 8, output_dim), out.shape
    assert jnp.allclose(out, ref, atol=2e-3, rtol=2e-3), float(
        jnp.max(jnp.abs(out - ref)))

    # Layer-wise (weight-tiled) fallback path, forced for coverage.
    out_lw = jax.block_until_ready(
        mlp_forward(x, prepared, force_layerwise=True))
    assert out_lw.shape == (2, 8, output_dim), out_lw.shape
    assert jnp.allclose(out_lw, ref, atol=2e-3, rtol=2e-3), float(
        jnp.max(jnp.abs(out_lw - ref)))

    print("KERNEL_OK")
</pallas_src>

<mosaic_0001>
module attributes {stable_mosaic.version = 11 : i64} {
  func.func @_mlp_fused_kernel(%arg0: i32, %arg1: memref<8x32xf32, #tpu.memory_space<vmem>>, %arg2: memref<32x64xbf16, #tpu.memory_space<vmem>>, %arg3: memref<1x64xf32, #tpu.memory_space<vmem>>, %arg4: memref<64x64xbf16, #tpu.memory_space<vmem>>, %arg5: memref<1x64xf32, #tpu.memory_space<vmem>>, %arg6: memref<64x16xbf16, #tpu.memory_space<vmem>>, %arg7: memref<1x16xf32, #tpu.memory_space<vmem>>, %arg8: memref<8x16xf32, #tpu.memory_space<vmem>>) attributes {dimension_semantics = [#tpu.dimension_semantics<parallel>], iteration_bounds = array<i64: 2>, scalar_prefetch = 0 : i64, scratch_operands = 0 : i64, tpu.core_type = #tpu.core_type<tc>, window_params = [{transform_indices = @transform_0, window_bounds = array<i64: 8, 32>}, {pipeline_mode = #tpu.pipeline_mode<synchronous>, transform_indices = @transform_1, window_bounds = array<i64: 32, 64>}, {pipeline_mode = #tpu.pipeline_mode<synchronous>, transform_indices = @transform_2, window_bounds = array<i64: 1, 64>}, {pipeline_mode = #tpu.pipeline_mode<synchronous>, transform_indices = @transform_3, window_bounds = array<i64: 64, 64>}, {pipeline_mode = #tpu.pipeline_mode<synchronous>, transform_indices = @transform_4, window_bounds = array<i64: 1, 64>}, {pipeline_mode = #tpu.pipeline_mode<synchronous>, transform_indices = @transform_5, window_bounds = array<i64: 64, 16>}, {pipeline_mode = #tpu.pipeline_mode<synchronous>, transform_indices = @transform_6, window_bounds = array<i64: 1, 16>}, {transform_indices = @transform_7, window_bounds = array<i64: 8, 16>}]} {
    %c0 = arith.constant 0 : index
    %c0_0 = arith.constant 0 : index
    %0 = vector.load %arg1[%c0, %c0_0] : memref<8x32xf32, #tpu.memory_space<vmem>>, vector<8x32xf32>
    %c0_1 = arith.constant 0 : index
    %c0_2 = arith.constant 0 : index
    %1 = vector.load %arg2[%c0_1, %c0_2] : memref<32x64xbf16, #tpu.memory_space<vmem>>, vector<32x64xbf16>
    %c0_3 = arith.constant 0 : index
    %c0_4 = arith.constant 0 : index
    %2 = vector.load %arg3[%c0_3, %c0_4] : memref<1x64xf32, #tpu.memory_space<vmem>>, vector<1x64xf32>
    %3 = arith.truncf %0 : vector<8x32xf32> to vector<8x32xbf16>
    %cst = arith.constant dense<0.000000e+00> : vector<8x64xf32>
    %4 = tpu.matmul %3, %1, %cst {dimension_numbers = #tpu.dot_dimension_numbers<[1], [0], [0], [1], [0, 0, 1, 1], [], []>} : vector<8x32xbf16>, vector<32x64xbf16>, vector<8x64xf32> -> vector<8x64xf32>
    %5 = vector.broadcast %2 : vector<1x64xf32> to vector<8x64xf32>
    %6 = arith.addf %4, %5 : vector<8x64xf32>
    %cst_5 = arith.constant 0.000000e+00 : f32
    %7 = vector.broadcast %cst_5 : f32 to vector<8x64xf32>
    %8 = arith.maximumf %6, %7 : vector<8x64xf32>
    %c0_6 = arith.constant 0 : index
    %c0_7 = arith.constant 0 : index
    %9 = vector.load %arg4[%c0_6, %c0_7] : memref<64x64xbf16, #tpu.memory_space<vmem>>, vector<64x64xbf16>
    %c0_8 = arith.constant 0 : index
    %c0_9 = arith.constant 0 : index
    %10 = vector.load %arg5[%c0_8, %c0_9] : memref<1x64xf32, #tpu.memory_space<vmem>>, vector<1x64xf32>
    %11 = arith.truncf %8 : vector<8x64xf32> to vector<8x64xbf16>
    %cst_10 = arith.constant dense<0.000000e+00> : vector<8x64xf32>
    %12 = tpu.matmul %11, %9, %cst_10 {dimension_numbers = #tpu.dot_dimension_numbers<[1], [0], [0], [1], [0, 0, 1, 1], [], []>} : vector<8x64xbf16>, vector<64x64xbf16>, vector<8x64xf32> -> vector<8x64xf32>
    %13 = vector.broadcast %10 : vector<1x64xf32> to vector<8x64xf32>
    %14 = arith.addf %12, %13 : vector<8x64xf32>
    %cst_11 = arith.constant 0.000000e+00 : f32
    %15 = vector.broadcast %cst_11 : f32 to vector<8x64xf32>
    %16 = arith.maximumf %14, %15 : vector<8x64xf32>
    %c0_12 = arith.constant 0 : index
    %c0_13 = arith.constant 0 : index
    %17 = vector.load %arg6[%c0_12, %c0_13] : memref<64x16xbf16, #tpu.memory_space<vmem>>, vector<64x16xbf16>
    %c0_14 = arith.constant 0 : index
    %c0_15 = arith.constant 0 : index
    %18 = vector.load %arg7[%c0_14, %c0_15] : memref<1x16xf32, #tpu.memory_space<vmem>>, vector<1x16xf32>
    %19 = arith.truncf %16 : vector<8x64xf32> to vector<8x64xbf16>
    %cst_16 = arith.constant dense<0.000000e+00> : vector<8x16xf32>
    %20 = tpu.matmul %19, %17, %cst_16 {dimension_numbers = #tpu.dot_dimension_numbers<[1], [0], [0], [1], [0, 0, 1, 1], [], []>} : vector<8x64xbf16>, vector<64x16xbf16>, vector<8x16xf32> -> vector<8x16xf32>
    %21 = vector.broadcast %18 : vector<1x16xf32> to vector<8x16xf32>
    %22 = arith.addf %20, %21 : vector<8x16xf32>
    %c0_17 = arith.constant 0 : index
    %c0_18 = arith.constant 0 : index
    %23 = vector.load %arg8[%c0_17, %c0_18] : memref<8x16xf32, #tpu.memory_space<vmem>>, vector<8x16xf32>
    tpu.vector_store %arg8[%c0_17, %c0_18], %22 {strides = array<i32>} : memref<8x16xf32, #tpu.memory_space<vmem>>, vector<8x16xf32>,
    return
  }
  func.func @transform_0(%arg0: i32) -> (i32, i32) {
    %c0_i32 = arith.constant 0 : i32
    %c0_i32_0 = arith.constant 0 : i32
    return %arg0, %c0_i32 : i32, i32
  }
  func.func @transform_1(%arg0: i32) -> (i32, i32) {
    %c0_i32 = arith.constant 0 : i32
    %c0_i32_0 = arith.constant 0 : i32
    %c0_i32_1 = arith.constant 0 : i32
    return %c0_i32, %c0_i32_0 : i32, i32
  }
  func.func @transform_2(%arg0: i32) -> (i32, i32) {
    %c0_i32 = arith.constant 0 : i32
    %c0_i32_0 = arith.constant 0 : i32
    %c0_i32_1 = arith.constant 0 : i32
    return %c0_i32, %c0_i32_0 : i32, i32
  }
  func.func @transform_3(%arg0: i32) -> (i32, i32) {
    %c0_i32 = arith.constant 0 : i32
    %c0_i32_0 = arith.constant 0 : i32
    %c0_i32_1 = arith.constant 0 : i32
    return %c0_i32, %c0_i32_0 : i32, i32
  }
  func.func @transform_4(%arg0: i32) -> (i32, i32) {
    %c0_i32 = arith.constant 0 : i32
    %c0_i32_0 = arith.constant 0 : i32
    %c0_i32_1 = arith.constant 0 : i32
    return %c0_i32, %c0_i32_0 : i32, i32
  }
  func.func @transform_5(%arg0: i32) -> (i32, i32) {
    %c0_i32 = arith.constant 0 : i32
    %c0_i32_0 = arith.constant 0 : i32
    %c0_i32_1 = arith.constant 0 : i32
    return %c0_i32, %c0_i32_0 : i32, i32
  }
  func.func @transform_6(%arg0: i32) -> (i32, i32) {
    %c0_i32 = arith.constant 0 : i32
    %c0_i32_0 = arith.constant 0 : i32
    %c0_i32_1 = arith.constant 0 : i32
    return %c0_i32, %c0_i32_0 : i32, i32
  }
  func.func @transform_7(%arg0: i32) -> (i32, i32) {
    %c0_i32 = arith.constant 0 : i32
    %c0_i32_0 = arith.constant 0 : i32
    return %arg0, %c0_i32 : i32, i32
  }
}

</mosaic_0001>

<llo_original>
// kernel: tpu_custom_call.1
$region0: #{tpu_custom_call.1}
  #allocation0 [shape = 'u32[]', space=smem, size = 0x4, offset = 0x4, fixed_abs, tag = 'smem constant byte address 0x4 - core index']
  #allocation1 [shape = 'u32[72,128]{1,0:T(1,128)}', space=vmem, size = 0x9000, scoped, tag = 'internal scratch']
  %s0 = inlined_call_operand.hbm [shape: f32[16,32], index: 0, kind: input, shape index: {}]
  %s1 = inlined_call_operand.hbm [shape: bf16[32,64], index: 1, kind: input, shape index: {}]
  %s2 = inlined_call_operand.vmem [shape: f32[1,64], index: 2, kind: input, shape index: {}]
  %s3 = inlined_call_operand.vmem [shape: bf16[64,64], index: 3, kind: input, shape index: {}]
  %s4 = inlined_call_operand.vmem [shape: f32[1,64], index: 4, kind: input, shape index: {}]
  %s5 = inlined_call_operand.vmem [shape: bf16[64,16], index: 5, kind: input, shape index: {}]
  %s6 = inlined_call_operand.vmem [shape: f32[1,16], index: 6, kind: input, shape index: {}]
  %s7 = inlined_call_operand.hbm [shape: f32[16,16], index: 7, kind: output, shape index: {}]
  %s8 = sld [smem:[#allocation0]]
  $region69: #{tpu_custom_call.1} parent=0
    _
  %s10 = ssub.s32 1, %s8
  %s11 = scalar_select 0, %s10, %s8
  $region1: #{tpu_custom_call.1} parent=0
    #allocation2 [shape = 'u8[8192]{0}', space=vmem, size = 0x2000, scoped, tag = 'input window, operand 0']
    #allocation3 [shape = 's32[2]{0}', space=sflag, size = 0x8, scoped, tag = 'scoped memory for tpu_custom_call.1']
    #allocation4 [shape = 's32[2]{0}', space=sflag, size = 0x8, scoped, tag = 'scoped memory for tpu_custom_call.1']
    #allocation5 [shape = 'u8[8192]{0}', space=vmem, size = 0x2000, scoped, tag = 'input window, operand 1, single buffered']
    #allocation6 [shape = 's32[1]{0}', space=sflag, size = 0x4, scoped, tag = 'scoped memory for tpu_custom_call.1']
    #allocation7 [shape = 'u8[8192]{0}', space=vmem, size = 0x2000, scoped, tag = 'output window, operand 0']
    %12 = vsyncpa [#allocation3], 0
    %s13 = scalar_lea.sflag [#allocation3], 1
    %14 = vsyncpa %s13, 0
    %15 = vsyncpa [#allocation6], 0
    %16 = vsyncpa [#allocation4], 0
    %s17 = scalar_lea.sflag [#allocation4], 1
    %18 = vsyncpa %s17, 0
    loop: start=0, step=1, limit=4
    $region2: #{tpu_custom_call.1} parent=1 // loop_pre_header
      _
    $region3: #{tpu_custom_call.1} parent=1 // loop_header
      %s20 = sphi 0, %s24
      %p21 = scmp.ge.s32.totalorder %s20, 4
      %s30 = sphi 0, %s32
      %s33 = sphi 0, %s30
      %s34 = sphi 0, %s33
      %s50 = sphi 0, %s34
      %s54 = sphi 0, %s54
      %s56 = sphi 0, %s54
      %s57 = sphi 0, %s56
      %s71 = sphi 0, %s57
      %s75 = sphi 0, %s75
      %s77 = sphi 0, %s75
      %s78 = sphi 0, %s77
      %s92 = sphi 0, %s78
      %s96 = sphi 0, %s96
      %s98 = sphi 0, %s96
      %s99 = sphi 0, %s98
      %s113 = sphi 0, %s99
      %s117 = sphi 0, %s117
      %s119 = sphi 0, %s117
      %s120 = sphi 0, %s119
      %s134 = sphi 0, %s120
      %s138 = sphi 0, %s138
      %s140 = sphi 0, %s138
      %s141 = sphi 0, %s140
      %s155 = sphi 0, %s141
      %s159 = sphi 0, %s159
      %s161 = sphi 0, %s159
      %s162 = sphi 0, %s161
      %s176 = sphi 0, %s162
      %s182 = sphi 0, %s184
      %s185 = sphi 0, %s182
      %s186 = sphi 0, %s185
      %s202 = sphi 0, %s186
    $region4: #{tpu_custom_call.1} parent=1 // loop_header_branch
      %23 = sbr.rel (%p21) target = $region8
    $region5: #{tpu_custom_call.1} parent=1 // loop_body
      %s25 = ssub.s32 %s20, 1
      %s26 = ssub.s32 %s20, 2
      %s27 = sadd.s32 %s20, 1
      %s28 = ssub.s32 %s20, %s27
      %p29 = scmp.eq.s32.totalorder %s28, 0
      %s31 = sadd.s32 %s30, 1
      %s32 = scalar_select %p29, %s30, %s31
      %p35 = pneg %p29
      %p36 = scmp.eq.s32.totalorder %s20, 1
      %p37 = por %p35, %p36
      %p38 = scmp.ne.s32.totalorder %s30, %s33
      %p39 = scmp.eq.s32.totalorder %s20, 0
      %p40 = por %p38, %p39
      %p41 = scmp.ne.s32.totalorder %s30, %s33
      %p42 = scmp.eq.s32.totalorder %s25, 1
      %p43 = por %p41, %p42
      %p44 = scmp.ne.s32.totalorder %s33, %s34
      %p45 = scmp.eq.s32.totalorder %s25, 0
      %p46 = por %p44, %p45
      %p47 = scmp.ne.s32.totalorder %s33, %s34
      %p48 = scmp.eq.s32.totalorder %s26, 1
      %p49 = por %p47, %p48
      %p51 = scmp.ne.s32.totalorder %s34, %s50
      %p52 = scmp.eq.s32.totalorder %s26, 0
      %p53 = por %p51, %p52
      %s55 = sadd.s32 %s54, 1
      %p58 = scmp.eq.s32.totalorder %s20, 1
      %p59 = scmp.ne.s32.totalorder %s54, %s56
      %p60 = scmp.eq.s32.totalorder %s20, 0
      %p61 = por %p59, %p60
      %p62 = scmp.ne.s32.totalorder %s54, %s56
      %p63 = scmp.eq.s32.totalorder %s25, 1
      %p64 = por %p62, %p63
      %p65 = scmp.ne.s32.totalorder %s56, %s57
      %p66 = scmp.eq.s32.totalorder %s25, 0
      %p67 = por %p65, %p66
      %p68 = scmp.ne.s32.totalorder %s56, %s57
      %p69 = scmp.eq.s32.totalorder %s26, 1
      %p70 = por %p68, %p69
      %p72 = scmp.ne.s32.totalorder %s57, %s71
      %p73 = scmp.eq.s32.totalorder %s26, 0
      %p74 = por %p72, %p73
      %s76 = sadd.s32 %s75, 1
      %p79 = scmp.eq.s32.totalorder %s20, 1
      %p80 = scmp.ne.s32.totalorder %s75, %s77
      %p81 = scmp.eq.s32.totalorder %s20, 0
      %p82 = por %p80, %p81
      %p83 = scmp.ne.s32.totalorder %s75, %s77
      %p84 = scmp.eq.s32.totalorder %s25, 1
      %p85 = por %p83, %p84
      %p86 = scmp.ne.s32.totalorder %s77, %s78
      %p87 = scmp.eq.s32.totalorder %s25, 0
      %p88 = por %p86, %p87
      %p89 = scmp.ne.s32.totalorder %s77, %s78
      %p90 = scmp.eq.s32.totalorder %s26, 1
      %p91 = por %p89, %p90
      %p93 = scmp.ne.s32.totalorder %s78, %s92
      %p94 = scmp.eq.s32.totalorder %s26, 0
      %p95 = por %p93, %p94
      %s97 = sadd.s32 %s96, 1
      %p100 = scmp.eq.s32.totalorder %s20, 1
      %p101 = scmp.ne.s32.totalorder %s96, %s98
      %p102 = scmp.eq.s32.totalorder %s20, 0
      %p103 = por %p101, %p102
      %p104 = scmp.ne.s32.totalorder %s96, %s98
      %p105 = scmp.eq.s32.totalorder %s25, 1
      %p106 = por %p104, %p105
      %p107 = scmp.ne.s32.totalorder %s98, %s99
      %p108 = scmp.eq.s32.totalorder %s25, 0
      %p109 = por %p107, %p108
      %p110 = scmp.ne.s32.totalorder %s98, %s99
      %p111 = scmp.eq.s32.totalorder %s26, 1
      %p112 = por %p110, %p111
      %p114 = scmp.ne.s32.totalorder %s99, %s113
      %p115 = scmp.eq.s32.totalorder %s26, 0
      %p116 = por %p114, %p115
      %s118 = sadd.s32 %s117, 1
      %p121 = scmp.eq.s32.totalorder %s20, 1
      %p122 = scmp.ne.s32.totalorder %s117, %s119
      %p123 = scmp.eq.s32.totalorder %s20, 0
      %p124 = por %p122, %p123
      %p125 = scmp.ne.s32.totalorder %s117, %s119
      %p126 = scmp.eq.s32.totalorder %s25, 1
      %p127 = por %p125, %p126
      %p128 = scmp.ne.s32.totalorder %s119, %s120
      %p129 = scmp.eq.s32.totalorder %s25, 0
      %p130 = por %p128, %p129
      %p131 = scmp.ne.s32.totalorder %s119, %s120
      %p132 = scmp.eq.s32.totalorder %s26, 1
      %p133 = por %p131, %p132
      %p135 = scmp.ne.s32.totalorder %s120, %s134
      %p136 = scmp.eq.s32.totalorder %s26, 0
      %p137 = por %p135, %p136
      %s139 = sadd.s32 %s138, 1
      %p142 = scmp.eq.s32.totalorder %s20, 1
      %p143 = scmp.ne.s32.totalorder %s138, %s140
      %p144 = scmp.eq.s32.totalorder %s20, 0
      %p145 = por %p143, %p144
      %p146 = scmp.ne.s32.totalorder %s138, %s140
      %p147 = scmp.eq.s32.totalorder %s25, 1
      %p148 = por %p146, %p147
      %p149 = scmp.ne.s32.totalorder %s140, %s141
      %p150 = scmp.eq.s32.totalorder %s25, 0
      %p151 = por %p149, %p150
      %p152 = scmp.ne.s32.totalorder %s140, %s141
      %p153 = scmp.eq.s32.totalorder %s26, 1
      %p154 = por %p152, %p153
      %p156 = scmp.ne.s32.totalorder %s141, %s155
      %p157 = scmp.eq.s32.totalorder %s26, 0
      %p158 = por %p156, %p157
      %s160 = sadd.s32 %s159, 1
      %p163 = scmp.eq.s32.totalorder %s20, 1
      %p164 = scmp.ne.s32.totalorder %s159, %s161
      %p165 = scmp.eq.s32.totalorder %s20, 0
      %p166 = por %p164, %p165
      %p167 = scmp.ne.s32.totalorder %s159, %s161
      %p168 = scmp.eq.s32.totalorder %s25, 1
      %p169 = por %p167, %p168
      %p170 = scmp.ne.s32.totalorder %s161, %s162
      %p171 = scmp.eq.s32.totalorder %s25, 0
      %p172 = por %p170, %p171
      %p173 = scmp.ne.s32.totalorder %s161, %s162
      %p174 = scmp.eq.s32.totalorder %s26, 1
      %p175 = por %p173, %p174
      %p177 = scmp.ne.s32.totalorder %s162, %s176
      %p178 = scmp.eq.s32.totalorder %s26, 0
      %p179 = por %p177, %p178
      %s180 = ssub.s32 %s20, %s27
      %p181 = scmp.eq.s32.totalorder %s180, 0
      %s183 = sadd.s32 %s182, 1
      %s184 = scalar_select %p181, %s182, %s183
      %p187 = pneg %p181
      %p188 = scmp.eq.s32.totalorder %s20, 1
      %p189 = por %p187, %p188
      %p190 = scmp.ne.s32.totalorder %s182, %s185
      %p191 = scmp.eq.s32.totalorder %s20, 0
      %p192 = por %p190, %p191
      %p193 = scmp.ne.s32.totalorder %s182, %s185
      %p194 = scmp.eq.s32.totalorder %s25, 1
      %p195 = por %p193, %p194
      %p196 = scmp.ne.s32.totalorder %s185, %s186
      %p197 = scmp.eq.s32.totalorder %s25, 0
      %p198 = por %p196, %p197
      %p199 = scmp.ne.s32.totalorder %s185, %s186
      %p200 = scmp.eq.s32.totalorder %s26, 1
      %p201 = por %p199, %p200
      %p203 = scmp.ne.s32.totalorder %s186, %s202
      %p204 = scmp.eq.s32.totalorder %s26, 0
      %p205 = por %p203, %p204
      %p206 = scmp.le.s32.totalorder 1, %s20
      %p207 = scmp.lt.s32.totalorder %s20, 3
      %p208 = pnand %p206, %p207
      %p209 = pneg %p208
      // Predicated region
      $region9: #{tpu_custom_call.1} parent=5 // pred_check
        _
      $region10: #{tpu_custom_call.1} parent=5 // pred_check_branch
        %211 = sbr.rel (%p208) target = $region12
      $region11: #{tpu_custom_call.1} parent=5 // pred_region
        %s212 = ssub.s32 %s20, 1
        // Predicated region
        $region13: #{tpu_custom_call.1} parent=11 // pred_check
          %p213 = pneg %p67
        $region14: #{tpu_custom_call.1} parent=11 // pred_check_branch
          %215 = sbr.rel (%p213) target = $region16
        $region15: #{tpu_custom_call.1} parent=11 // pred_region
          %217 = vsyncadd [#allocation6], 0
          %s218 = sshll.u32 %s1, 4
          %s219 = int_to_ptr.hbm [resolvable:$true] %s218
          %s220 = sshll.u32 [#allocation5], 4
          %s221 = int_to_ptr.vmem [resolvable:$true] %s220
          %226 = dma.hbm_to_vmem [thread:$0]  %s219, 256, %s221, [#allocation6], 64, 64, 4
        $region16: #{tpu_custom_call.1} parent=11 // pred_fallthru
          _
        // Predicated region
        $region17: #{tpu_custom_call.1} parent=11 // pred_check
          %p227 = pneg %p88
        $region18: #{tpu_custom_call.1} parent=11 // pred_check_branch
          %229 = sbr.rel (%p227) target = $region20
        $region19: #{tpu_custom_call.1} parent=11 // pred_region
          _
        $region20: #{tpu_custom_call.1} parent=11 // pred_fallthru
          _
        // Predicated region
        $region21: #{tpu_custom_call.1} parent=11 // pred_check
          %p230 = pneg %p109
        $region22: #{tpu_custom_call.1} parent=11 // pred_check_branch
          %232 = sbr.rel (%p230) target = $region24
        $region23: #{tpu_custom_call.1} parent=11 // pred_region
          _
        $region24: #{tpu_custom_call.1} parent=11 // pred_fallthru
          _
        // Predicated region
        $region25: #{tpu_custom_call.1} parent=11 // pred_check
          %p233 = pneg %p130
        $region26: #{tpu_custom_call.1} parent=11 // pred_check_branch
          %235 = sbr.rel (%p233) target = $region28
        $region27: #{tpu_custom_call.1} parent=11 // pred_region
          _
        $region28: #{tpu_custom_call.1} parent=11 // pred_fallthru
          _
        // Predicated region
        $region29: #{tpu_custom_call.1} parent=11 // pred_check
          %p236 = pneg %p151
        $region30: #{tpu_custom_call.1} parent=11 // pred_check_branch
          %238 = sbr.rel (%p236) target = $region32
        $region31: #{tpu_custom_call.1} parent=11 // pred_region
          _
        $region32: #{tpu_custom_call.1} parent=11 // pred_fallthru
          _
        // Predicated region
        $region33: #{tpu_custom_call.1} parent=11 // pred_check
          %p239 = pneg %p172
        $region34: #{tpu_custom_call.1} parent=11 // pred_check_branch
          %241 = sbr.rel (%p239) target = $region36
        $region35: #{tpu_custom_call.1} parent=11 // pred_region
          _
        $region36: #{tpu_custom_call.1} parent=11 // pred_fallthru
          _
      $region12: #{tpu_custom_call.1} parent=5 // pred_fallthru
        _
      %p242 = scmp.lt.s32.totalorder %s20, 2
      // Predicated region
      $region37: #{tpu_custom_call.1} parent=5 // pred_check
        %p243 = pneg %p242
      $region38: #{tpu_custom_call.1} parent=5 // pred_check_branch
        %245 = sbr.rel (%p243) target = $region40
      $region39: #{tpu_custom_call.1} parent=5 // pred_region
        // Predicated region
        $region41: #{tpu_custom_call.1} parent=39 // pred_check
          %p246 = pneg %p40
        $region42: #{tpu_custom_call.1} parent=39 // pred_check_branch
          %248 = sbr.rel (%p246) target = $region44
        $region43: #{tpu_custom_call.1} parent=39 // pred_region
          %s249 = sand.u32 %s30, 1
          %s250 = scalar_lea.sflag [#allocation3], %s249
          %s251 = sand.u32 %s30, 1
          %s252 = smul.addr %s251, 8
          %s253 = scalar_lea.vmem [#allocation2], %s252
          %255 = vsyncadd %s250, 0
          %s256 = smul.addr %s20, 8
          %s257 = scalar_lea.hbm %s0, %s256
          %s259 = sshll.u32 %s257, 4
          %s260 = int_to_ptr.hbm [resolvable:$true] %s259
          %s261 = sshll.u32 %s253, 4
          %s262 = int_to_ptr.vmem [resolvable:$true] %s261
          %264 = dma.hbm_to_vmem [thread:$0]  %s260, 128, %s262, %s250
        $region44: #{tpu_custom_call.1} parent=39 // pred_fallthru
          _
      $region40: #{tpu_custom_call.1} parent=5 // pred_fallthru
        _
      %p265 = scmp.le.s32.totalorder 1, %s20
      %p266 = scmp.lt.s32.totalorder %s20, 3
      %p267 = pnand %p265, %p266
      %p268 = pneg %p267
      // Predicated region
      $region45: #{tpu_custom_call.1} parent=5 // pred_check
        _
      $region46: #{tpu_custom_call.1} parent=5 // pred_check_branch
        %270 = sbr.rel (%p267) target = $region48
      $region47: #{tpu_custom_call.1} parent=5 // pred_region
        %s271 = ssub.s32 %s20, 1
        %s272 = sand.u32 %s33, 1
        %s273 = scalar_lea.sflag [#allocation3], %s272
        %s274 = sand.u32 %s33, 1
        %s275 = smul.addr %s274, 8
        %s276 = scalar_lea.vmem [#allocation2], %s275
        // Predicated region
        $region49: #{tpu_custom_call.1} parent=47 // pred_check
          %p277 = pneg %p46
        $region50: #{tpu_custom_call.1} parent=47 // pred_check_branch
          %279 = sbr.rel (%p277) target = $region52
        $region51: #{tpu_custom_call.1} parent=47 // pred_region
          %281 = dma.done %s273, 128
        $region52: #{tpu_custom_call.1} parent=47 // pred_fallthru
          _
        // Predicated region
        $region53: #{tpu_custom_call.1} parent=47 // pred_check
          %p282 = pneg %p67
        $region54: #{tpu_custom_call.1} parent=47 // pred_check_branch
          %284 = sbr.rel (%p282) target = $region56
        $region55: #{tpu_custom_call.1} parent=47 // pred_region
          %286 = dma.done [#allocation6], 256
        $region56: #{tpu_custom_call.1} parent=47 // pred_fallthru
          _
        %s287 = sand.u32 %s33, 1
        %s288 = scalar_lea.sflag [#allocation3], %s287
        %s289 = sand.u32 %s33, 1
        %s290 = smul.addr %s289, 8
        %s291 = scalar_lea.vmem [#allocation2], %s290
        %p292 = pneg %p46
        %p293 = pneg %p43
        %p294 = pneg %p67
        %p295 = pneg %p64
        %p296 = pneg %p88
        %p297 = pneg %p85
        %p298 = pneg %p109
        %p299 = pneg %p106
        %p300 = pneg %p130
        %p301 = pneg %p127
        %p302 = pneg %p151
        %p303 = pneg %p148
        %p304 = pneg %p172
        %p305 = pneg %p169
        %p306 = pneg %p198
        %p307 = pneg %p195
        %s308 = sand.u32 %s185, 1
        %s309 = scalar_lea.sflag [#allocation4], %s308
        %s310 = sand.u32 %s185, 1
        %s311 = smul.addr %s310, 8
        %s312 = scalar_lea.vmem [#allocation7], %s311
        %v314 = vld [vmem:[%s276] sm:$0xff]
        %v315 = vld [vmem:[#allocation5] sm:$0xf]
        %v316 = vld [vmem:[#allocation5 + $0x4] sm:$0xf]
        %v317 = vld [vmem:[#allocation5 + $0x8] sm:$0xf]
        %v318 = vld [vmem:[#allocation5 + $0xc] sm:$0xf]
        %v319 = vld [vmem:[%s2] sm:$0x1]
        %v320 = vpack.c.bf16 %v314, %v314
        %v322 = vperm.slane %v319, 0
        %v328 = vunpack.c.l.b16 %v315
        %v329 = vunpack.c.l.b16 %v316
        %v330 = vunpack.c.l.b16 %v317
        %v331 = vunpack.c.l.b16 %v318
        %v332 = vpack.c.b16 %v329, %v328
        %v333 = vpack.c.b16 %v331, %v330
        %vm336 = vcmask 261120
        %v338 = vsel %vm336, %v320, 0
        %340 = vmatpush.bf16.msra.mxu0 0
        %341 = vmatpush.bf16.msra.mxu0 0
        %342 = vmatpush.bf16.msra.mxu0 0
        %343 = vmatpush.bf16.msra.mxu0 0
        %344 = vmatpush.bf16.msra.mxu0 0
        %345 = vmatpush.bf16.msra.mxu0 0
        %346 = vmatpush.bf16.msra.mxu0 %v333
        %347 = vmatpush.bf16.msra.mxu0 %v332
        %348 = vmatmul.bf16.gmra.mxu0 %v338
        %v349 = vpop.f32.mrf.mxu0
        %v350 = vadd.f32 %v322, %v349
        %v351 = vpop.f32.mrf.mxu0
        %352 = vdwg.mxu0
        %v353 = vmax.f32 %v350, 0.0
        %v354 = vld [vmem:[%s3] sm:$0xf]
        %v355 = vld [vmem:[%s3 + $0x4] sm:$0xf]
        %v356 = vld [vmem:[%s3 + $0x8] sm:$0xf]
        %v357 = vld [vmem:[%s3 + $0xc] sm:$0xf]
        %v358 = vld [vmem:[%s3 + $0x10] sm:$0xf]
        %v359 = vld [vmem:[%s3 + $0x14] sm:$0xf]
        %v360 = vld [vmem:[%s3 + $0x18] sm:$0xf]
        %v361 = vld [vmem:[%s3 + $0x1c] sm:$0xf]
        %v362 = vld [vmem:[%s4] sm:$0x1]
        %v363 = vpack.c.bf16 %v353, %v353
        %v365 = vperm.slane %v362, 0
        %v375 = vunpack.c.l.b16 %v354
        %v376 = vunpack.c.l.b16 %v355
        %v377 = vunpack.c.l.b16 %v356
        %v378 = vunpack.c.l.b16 %v357
        %v379 = vunpack.c.l.b16 %v358
        %v380 = vunpack.c.l.b16 %v359
        %v381 = vunpack.c.l.b16 %v360
        %v382 = vunpack.c.l.b16 %v361
        %v383 = vpack.c.b16 %v376, %v375
        %v384 = vpack.c.b16 %v378, %v377
        %v385 = vpack.c.b16 %v380, %v379
        %v386 = vpack.c.b16 %v382, %v381
        %vm391 = vcmask 523264
        %v393 = vsel %vm391, %v363, 0
        %395 = vmatpush.bf16.msra.mxu0 0
        %396 = vmatpush.bf16.msra.mxu0 0
        %397 = vmatpush.bf16.msra.mxu0 0
        %398 = vmatpush.bf16.msra.mxu0 0
        %399 = vmatpush.bf16.msra.mxu0 %v386
        %400 = vmatpush.bf16.msra.mxu0 %v385
        %401 = vmatpush.bf16.msra.mxu0 %v384
        %402 = vmatpush.bf16.msra.mxu0 %v383
        %403 = vmatmul.bf16.gmra.mxu0 %v393
        %v404 = vpop.f32.mrf.mxu0
        %v405 = vadd.f32 %v365, %v404
        %v406 = vpop.f32.mrf.mxu0
        %407 = vdwg.mxu0
        %v408 = vmax.f32 %v405, 0.0
        %v409 = vld [vmem:[%s5] sm:$0xf]
        %v410 = vld [vmem:[%s5 + $0x4] sm:$0xf]
        %v411 = vld [vmem:[%s5 + $0x8] sm:$0xf]
        %v412 = vld [vmem:[%s5 + $0xc] sm:$0xf]
        %v413 = vld [vmem:[%s5 + $0x10] sm:$0xf]
        %v414 = vld [vmem:[%s5 + $0x14] sm:$0xf]
        %v415 = vld [vmem:[%s5 + $0x18] sm:$0xf]
        %v416 = vld [vmem:[%s5 + $0x1c] sm:$0xf]
        %v417 = vld [vmem:[%s6] sm:$0x1]
        %v418 = vpack.c.bf16 %v408, %v408
        %v420 = vperm.slane %v417, 0
        %v430 = vunpack.c.l.b16 %v409
        %v431 = vunpack.c.l.b16 %v410
        %v432 = vunpack.c.l.b16 %v411
        %v433 = vunpack.c.l.b16 %v412
        %v434 = vunpack.c.l.b16 %v413
        %v435 = vunpack.c.l.b16 %v414
        %v436 = vunpack.c.l.b16 %v415
        %v437 = vunpack.c.l.b16 %v416
        %v438 = vpack.c.b16 %v431, %v430
        %v439 = vpack.c.b16 %v433, %v432
        %v440 = vpack.c.b16 %v435, %v434
        %v441 = vpack.c.b16 %v437, %v436
        %v447 = vsel %vm391, %v418, 0
        %449 = vmatpush.bf16.msra.mxu0 0
        %450 = vmatpush.bf16.msra.mxu0 0
        %451 = vmatpush.bf16.msra.mxu0 0
        %452 = vmatpush.bf16.msra.mxu0 0
        %453 = vmatpush.bf16.msra.mxu0 %v441
        %454 = vmatpush.bf16.msra.mxu0 %v440
        %455 = vmatpush.bf16.msra.mxu0 %v439
        %456 = vmatpush.bf16.msra.mxu0 %v438
        %457 = vmatmul.bf16.gmra.mxu0 %v447
        %v458 = vpop.f32.mrf.mxu0
        %v459 = vadd.f32 %v420, %v458
        %v460 = vpop.f32.mrf.mxu0
        %461 = vdwg.mxu0
        %vm462 = vcmask 130048
        %463 = vst.msk [vmem:[%s312] sm:$0xff] %vm462, %v459
        %s464 = sand.u32 %s185, 1
        %s465 = scalar_lea.sflag [#allocation4], %s464
        %s466 = sand.u32 %s185, 1
        %s467 = smul.addr %s466, 8
        %s468 = scalar_lea.vmem [#allocation7], %s467
        // Predicated region
        $region57: #{tpu_custom_call.1} parent=47 // pred_check
          %p469 = pneg %p195
        $region58: #{tpu_custom_call.1} parent=47 // pred_check_branch
          %471 = sbr.rel (%p469) target = $region60
        $region59: #{tpu_custom_call.1} parent=47 // pred_region
          %473 = vsyncadd %s465, 0
          %s474 = smul.addr %s25, 8
          %s475 = scalar_lea.hbm %s7, %s474
          %s477 = sshll.u32 %s468, 4
          %s478 = int_to_ptr.vmem [resolvable:$true] %s477
          %s479 = sshll.u32 %s475, 4
          %s480 = int_to_ptr.hbm [resolvable:$true] %s479
          %482 = dma.vmem_to_hbm [thread:$0]  %s478, 128, %s480, %s465
        $region60: #{tpu_custom_call.1} parent=47 // pred_fallthru
          _
      $region48: #{tpu_custom_call.1} parent=5 // pred_fallthru
        _
      %p483 = scmp.le.s32.totalorder 2, %s20
      // Predicated region
      $region61: #{tpu_custom_call.1} parent=5 // pred_check
        %p484 = pneg %p483
      $region62: #{tpu_custom_call.1} parent=5 // pred_check_branch
        %486 = sbr.rel (%p484) target = $region64
      $region63: #{tpu_custom_call.1} parent=5 // pred_region
        %s487 = ssub.s32 %s20, 2
        // Predicated region
        $region65: #{tpu_custom_call.1} parent=63 // pred_check
          %p488 = pneg %p201
        $region66: #{tpu_custom_call.1} parent=63 // pred_check_branch
          %490 = sbr.rel (%p488) target = $region68
        $region67: #{tpu_custom_call.1} parent=63 // pred_region
          %s491 = sand.u32 %s186, 1
          %s492 = scalar_lea.sflag [#allocation4], %s491
          %s493 = sand.u32 %s186, 1
          %s494 = smul.addr %s493, 8
          %s495 = scalar_lea.vmem [#allocation7], %s494
          %497 = dma.done %s492, 128
        $region68: #{tpu_custom_call.1} parent=63 // pred_fallthru
          _
      $region64: #{tpu_custom_call.1} parent=5 // pred_fallthru
        _
    $region6: #{tpu_custom_call.1} parent=1 // loop_footer
      %s24 = sadd.s32 1, %s20
    $region7: #{tpu_custom_call.1} parent=1 // loop_footer_branch
      %19 = sbr.rel target = $region3
    $region8: #{tpu_custom_call.1} parent=1 // loop_exit
      _
    %498 = vsyncpa [#allocation3], 1
    %s499 = scalar_lea.sflag [#allocation3], 1
    %500 = vsyncpa %s499, 1
    %501 = vsyncpa [#allocation6], 1
    %502 = vsyncpa [#allocation4], 1
    %s503 = scalar_lea.sflag [#allocation4], 1
    %504 = vsyncpa %s503, 1

</llo_original>
